<compile_context>
chip_gen: v6e
topology: v6e:2x2x1
jax: 0.10.0
libtpu: 0.0.40
codegen_flags: <defaults>
</compile_context>

<pallas_src>
import jax
import jax.numpy as jnp
from jax.experimental import pallas as pl
from jax.experimental.pallas import tpu as pltpu


LANE = 128        # lane width: hidden is padded to a multiple of this
SUBLANE = 8       # f32 sublane granule: batch tiles are multiples of this
TILE_B_CAP = 1024  # max rows per grid step


def _round_up(n: int, m: int) -> int:
    return ((n + m - 1) // m) * m


def _choose_tile_b(batch: int, cap: int = TILE_B_CAP) -> int:
    """Largest batch tile (multiple of 8, <= cap) giving >=2 / even tile count."""
    if batch <= 2 * SUBLANE:
        return _round_up(max(batch, 1), SUBLANE)
    pairs = pl.cdiv(batch, 2 * cap)                       # how many tile-pairs
    return min(cap, _round_up(pl.cdiv(batch, 2 * pairs), SUBLANE))


def _gan_disc_kernel(x_ref, w1_ref, b1_ref, w2_ref, b2_ref, w3_ref, b3_ref, o_ref):
    # Layer 1: Linear + ReLU  (bf16 x bf16 on the MXU, f32 accumulation).
    x = x_ref[...].astype(jnp.bfloat16)
    h1 = jnp.dot(x, w1_ref[...], preferred_element_type=jnp.float32) + b1_ref[...]
    h1 = jnp.maximum(h1, 0.0)

    # Layer 2: Linear + ReLU.
    h2 = jnp.dot(h1.astype(jnp.bfloat16), w2_ref[...],
                 preferred_element_type=jnp.float32) + b2_ref[...]
    h2 = jnp.maximum(h2, 0.0)

    # Layer 3 (out_features = 1): VPU multiply + XLU lane reduce, skip the MXU.
    # w3 is stored as a (1, hidden_pad) f32 row, b3 as (1, 1) f32.
    logits = jnp.sum(h2 * w3_ref[...], axis=-1, keepdims=True) + b3_ref[...]

    # Exact sigmoid (EUP exp + divide) for parity with torch.sigmoid.
    o_ref[...] = (1.0 / (1.0 + jnp.exp(-logits))).astype(o_ref.dtype)


def _run_pallas(x, w1, b1, w2, b2, w3, b3, tile_b, single_buffer_weights):
    batch, input_dim = x.shape
    hidden_pad = w1.shape[1]
    num_tiles = pl.cdiv(batch, tile_b)

    def resident(shape):
        # Constant index_map -> stays VMEM-resident across grid steps (no
        # re-DMA).  Single buffering avoids paying 2x VMEM for data that never
        # changes (important on v7x's 64 MiB VMEM at large hidden).
        if single_buffer_weights:
            return pl.BlockSpec(shape, lambda i: (0, 0),
                                pipeline_mode=pl.Buffered(1))
        return pl.BlockSpec(shape, lambda i: (0, 0))

    # Explicit VMEM budget: weights (+2x if double-buffered) + double-buffered
    # x/out stream tiles + f32 intermediates, with 2x margin.  Floor 16 MiB
    # (v5e scoped default), cap 64 MiB (v7x physical).
    wbytes = (w1.size * w1.dtype.itemsize + w2.size * w2.dtype.itemsize
              + b1.size * b1.dtype.itemsize + b2.size * b2.dtype.itemsize
              + w3.size * w3.dtype.itemsize + b3.size * b3.dtype.itemsize)
    est = ((1 if single_buffer_weights else 2) * wbytes
           + 2 * tile_b * input_dim * x.dtype.itemsize      # streamed x
           + 2 * tile_b * 4                                  # streamed out
           + 3 * tile_b * hidden_pad * 4)                    # f32 h1/h2/temps
    vmem_limit = int(min(64 << 20, max(2 * est, 16 << 20)))

    cost = pl.CostEstimate(
        flops=2 * batch * (input_dim * hidden_pad + hidden_pad * hidden_pad
                           + hidden_pad),
        transcendentals=batch,
        bytes_accessed=int(x.size * x.dtype.itemsize + wbytes + batch * 4),
    )

    return pl.pallas_call(
        _gan_disc_kernel,
        out_shape=jax.ShapeDtypeStruct((batch, 1), jnp.float32),
        grid=(num_tiles,),
        in_specs=[
            pl.BlockSpec((tile_b, input_dim), lambda i: (i, 0)),  # x: batch tiles
            resident((input_dim, hidden_pad)),                    # w1 (bf16)
            resident((1, hidden_pad)),                            # b1 (f32)
            resident((hidden_pad, hidden_pad)),                   # w2 (bf16)
            resident((1, hidden_pad)),                            # b2 (f32)
            resident((1, hidden_pad)),                            # w3 row (f32)
            resident((1, 1)),                                     # b3 (f32)
        ],
        out_specs=pl.BlockSpec((tile_b, 1), lambda i: (i, 0)),
        compiler_params=pltpu.CompilerParams(
            dimension_semantics=("parallel",),   # shard batch tiles across TCs
            vmem_limit_bytes=vmem_limit,
        ),
        cost_estimate=cost,
    )(x, w1, b1, w2, b2, w3, b3)


def gan_discriminator_forward(x, params, tile_cap: int = TILE_B_CAP):
    """Forward pass.  x: (B, input_dim) f32 (or bf16).  Returns (B, 1) f32.

    No wrapper-side padding of x: ragged last tiles are handled by Pallas
    partial-block masking (row-wise compute, OOB stores dropped).
    """
    batch = x.shape[0]
    tile_b = _choose_tile_b(batch, tile_cap)
    args = (x, params["w1"], params["b1"], params["w2"], params["b2"],
            params["w3"], params["b3"])
    try:
        out = _run_pallas(*args, tile_b=tile_b, single_buffer_weights=True)
        return jax.block_until_ready(out)
    except Exception:
        # pl.Buffered(1) not lowerable on this build: fall back to the default
        # (double-buffered) resident weights.  Same math either way.
        return _run_pallas(*args, tile_b=tile_b, single_buffer_weights=False)


def init_params(key, input_dim, hidden_dim, lane=LANE):
    """PyTorch-style U(+/- 1/sqrt(fan_in)) init.

    * Matmul weights are stored transposed as (in, out) and cast to bf16
      (MXU-native); biases, the final-layer row w3 and b3 stay f32 (VPU path).
    * hidden is zero-padded to a multiple of 128 so every vreg is lane-dense;
      zero pad columns/rows leave the forward math exactly unchanged.
    """
    hidden_pad = _round_up(hidden_dim, lane)

    def linear_init(k, fan_in, fan_out):
        kw, kb = jax.random.split(k)
        bound = 1.0 / jnp.sqrt(fan_in)
        w = jax.random.uniform(kw, (fan_in, fan_out), jnp.float32, -bound, bound)
        b = jax.random.uniform(kb, (1, fan_out), jnp.float32, -bound, bound)
        return w, b

    k1, k2, k3 = jax.random.split(key, 3)
    w1, b1 = linear_init(k1, input_dim, hidden_dim)
    w2, b2 = linear_init(k2, hidden_dim, hidden_dim)
    w3, b3 = linear_init(k3, hidden_dim, 1)

    pad_h = hidden_pad - hidden_dim
    w1 = jnp.pad(w1, ((0, 0), (0, pad_h)))
    b1 = jnp.pad(b1, ((0, 0), (0, pad_h)))
    w2 = jnp.pad(w2, ((0, pad_h), (0, pad_h)))
    b2 = jnp.pad(b2, ((0, 0), (0, pad_h)))
    w3 = jnp.pad(w3.reshape(1, hidden_dim), ((0, 0), (0, pad_h)))

    return {
        "w1": w1.astype(jnp.bfloat16), "b1": b1,
        "w2": w2.astype(jnp.bfloat16), "b2": b2,
        "w3": w3,                      # (1, hidden_pad) f32 row for the VPU layer
        "b3": b3.reshape(1, 1),
    }


def _reference_forward(x, p):
    """Pure-JAX f32 reference using the same (bf16-rounded, zero-padded) weights."""
    w1 = p["w1"].astype(jnp.float32)
    w2 = p["w2"].astype(jnp.float32)
    h1 = jnp.maximum(x @ w1 + p["b1"], 0.0)
    h2 = jnp.maximum(h1 @ w2 + p["b2"], 0.0)
    logits = jnp.sum(h2 * p["w3"], axis=-1, keepdims=True) + p["b3"]
    return jax.nn.sigmoid(logits)


if __name__ == "__main__":
    input_dim, hidden_dim = 16, 32   # hidden is padded to 128 lanes internally

    key = jax.random.PRNGKey(0)
    kx1, kx2, kp = jax.random.split(key, 3)
    params = init_params(kp, input_dim, hidden_dim)

    # Small batch: a single 8-row tile.
    x_small = jax.random.normal(kx1, (8, input_dim), dtype=jnp.float32)
    out_small = jax.block_until_ready(gan_discriminator_forward(x_small, params))
    ref_small = _reference_forward(x_small, params)
    assert out_small.shape == (8, 1)
    assert bool(jnp.all(jnp.isfinite(out_small)))
    assert jnp.allclose(out_small, ref_small, atol=2e-2, rtol=0), (
        float(jnp.max(jnp.abs(out_small - ref_small))))

    # Ragged batch not divisible by the tile: exercises the 2-tile grid
    # (v7x megacore) and the un-padded partial last block (OOB stores dropped).
    x_big = jax.random.normal(kx2, (300, input_dim), dtype=jnp.float32)
    out_big = jax.block_until_ready(gan_discriminator_forward(x_big, params))
    ref_big = _reference_forward(x_big, params)
    assert out_big.shape == (300, 1)
    assert bool(jnp.all(jnp.isfinite(out_big)))
    assert jnp.allclose(out_big, ref_big, atol=2e-2, rtol=0), (
        float(jnp.max(jnp.abs(out_big - ref_big))))

    print("KERNEL_OK")
</pallas_src>

<mosaic_0001>
module attributes {stable_mosaic.version = 11 : i64} {
  func.func @_gan_disc_kernel(%arg0: i32, %arg1: memref<8x16xf32, #tpu.memory_space<vmem>>, %arg2: memref<16x128xbf16, #tpu.memory_space<vmem>>, %arg3: memref<1x128xf32, #tpu.memory_space<vmem>>, %arg4: memref<128x128xbf16, #tpu.memory_space<vmem>>, %arg5: memref<1x128xf32, #tpu.memory_space<vmem>>, %arg6: memref<1x128xf32, #tpu.memory_space<vmem>>, %arg7: memref<1x1xf32, #tpu.memory_space<vmem>>, %arg8: memref<8x1xf32, #tpu.memory_space<vmem>>) attributes {dimension_semantics = [#tpu.dimension_semantics<parallel>], iteration_bounds = array<i64: 1>, scalar_prefetch = 0 : i64, scratch_operands = 0 : i64, tpu.core_type = #tpu.core_type<tc>, window_params = [{transform_indices = @transform_0, window_bounds = array<i64: 8, 16>}, {pipeline_mode = #tpu.pipeline_mode<synchronous>, transform_indices = @transform_1, window_bounds = array<i64: 16, 128>}, {pipeline_mode = #tpu.pipeline_mode<synchronous>, transform_indices = @transform_2, window_bounds = array<i64: 1, 128>}, {pipeline_mode = #tpu.pipeline_mode<synchronous>, transform_indices = @transform_3, window_bounds = array<i64: 128, 128>}, {pipeline_mode = #tpu.pipeline_mode<synchronous>, transform_indices = @transform_4, window_bounds = array<i64: 1, 128>}, {pipeline_mode = #tpu.pipeline_mode<synchronous>, transform_indices = @transform_5, window_bounds = array<i64: 1, 128>}, {pipeline_mode = #tpu.pipeline_mode<synchronous>, transform_indices = @transform_6, window_bounds = array<i64: 1, 1>}, {transform_indices = @transform_7, window_bounds = array<i64: 8, 1>}]} {
    %c0 = arith.constant 0 : index
    %c0_0 = arith.constant 0 : index
    %0 = vector.load %arg1[%c0, %c0_0] : memref<8x16xf32, #tpu.memory_space<vmem>>, vector<8x16xf32>
    %1 = arith.truncf %0 : vector<8x16xf32> to vector<8x16xbf16>
    %c0_1 = arith.constant 0 : index
    %c0_2 = arith.constant 0 : index
    %2 = vector.load %arg2[%c0_1, %c0_2] : memref<16x128xbf16, #tpu.memory_space<vmem>>, vector<16x128xbf16>
    %cst = arith.constant dense<0.000000e+00> : vector<8x128xf32>
    %3 = tpu.matmul %1, %2, %cst {dimension_numbers = #tpu.dot_dimension_numbers<[1], [0], [0], [1], [0, 0, 1, 1], [], []>} : vector<8x16xbf16>, vector<16x128xbf16>, vector<8x128xf32> -> vector<8x128xf32>
    %c0_3 = arith.constant 0 : index
    %c0_4 = arith.constant 0 : index
    %4 = vector.load %arg3[%c0_3, %c0_4] : memref<1x128xf32, #tpu.memory_space<vmem>>, vector<1x128xf32>
    %5 = vector.broadcast %4 : vector<1x128xf32> to vector<8x128xf32>
    %6 = arith.addf %3, %5 : vector<8x128xf32>
    %cst_5 = arith.constant 0.000000e+00 : f32
    %7 = vector.broadcast %cst_5 : f32 to vector<8x128xf32>
    %8 = arith.maximumf %6, %7 : vector<8x128xf32>
    %9 = arith.truncf %8 : vector<8x128xf32> to vector<8x128xbf16>
    %c0_6 = arith.constant 0 : index
    %c0_7 = arith.constant 0 : index
    %10 = vector.load %arg4[%c0_6, %c0_7] : memref<128x128xbf16, #tpu.memory_space<vmem>>, vector<128x128xbf16>
    %cst_8 = arith.constant dense<0.000000e+00> : vector<8x128xf32>
    %11 = tpu.matmul %9, %10, %cst_8 {dimension_numbers = #tpu.dot_dimension_numbers<[1], [0], [0], [1], [0, 0, 1, 1], [], []>} : vector<8x128xbf16>, vector<128x128xbf16>, vector<8x128xf32> -> vector<8x128xf32>
    %c0_9 = arith.constant 0 : index
    %c0_10 = arith.constant 0 : index
    %12 = vector.load %arg5[%c0_9, %c0_10] : memref<1x128xf32, #tpu.memory_space<vmem>>, vector<1x128xf32>
    %13 = vector.broadcast %12 : vector<1x128xf32> to vector<8x128xf32>
    %14 = arith.addf %11, %13 : vector<8x128xf32>
    %cst_11 = arith.constant 0.000000e+00 : f32
    %15 = vector.broadcast %cst_11 : f32 to vector<8x128xf32>
    %16 = arith.maximumf %14, %15 : vector<8x128xf32>
    %c0_12 = arith.constant 0 : index
    %c0_13 = arith.constant 0 : index
    %17 = vector.load %arg6[%c0_12, %c0_13] : memref<1x128xf32, #tpu.memory_space<vmem>>, vector<1x128xf32>
    %18 = vector.broadcast %17 : vector<1x128xf32> to vector<8x128xf32>
    %19 = arith.mulf %16, %18 : vector<8x128xf32>
    %cst_14 = arith.constant dense<0.000000e+00> : vector<8xf32>
    %20 = vector.multi_reduction <add>, %19, %cst_14 [1] : vector<8x128xf32> to vector<8xf32>
    %21 = vector.shape_cast %20 : vector<8xf32> to vector<8x1xf32>
    %c0_15 = arith.constant 0 : index
    %c0_16 = arith.constant 0 : index
    %22 = vector.load %arg7[%c0_15, %c0_16] : memref<1x1xf32, #tpu.memory_space<vmem>>, vector<1x1xf32>
    %23 = vector.broadcast %22 : vector<1x1xf32> to vector<8x1xf32>
    %24 = arith.addf %21, %23 : vector<8x1xf32>
    %cst_17 = arith.constant 0.000000e+00 : f32
    %25 = vector.broadcast %cst_17 : f32 to vector<8x1xf32>
    %26 = arith.subf %25, %24 : vector<8x1xf32>
    %27 = math.exp %26 : vector<8x1xf32>
    %cst_18 = arith.constant 1.000000e+00 : f32
    %28 = vector.broadcast %cst_18 : f32 to vector<8x1xf32>
    %29 = arith.addf %28, %27 : vector<8x1xf32>
    %cst_19 = arith.constant 1.000000e+00 : f32
    %30 = vector.broadcast %cst_19 : f32 to vector<8x1xf32>
    %31 = arith.divf %30, %29 : vector<8x1xf32>
    %c0_20 = arith.constant 0 : index
    %c0_21 = arith.constant 0 : index
    %32 = vector.load %arg8[%c0_20, %c0_21] : memref<8x1xf32, #tpu.memory_space<vmem>>, vector<8x1xf32>
    tpu.vector_store %arg8[%c0_20, %c0_21], %31 {strides = array<i32>} : memref<8x1xf32, #tpu.memory_space<vmem>>, vector<8x1xf32>,
    return
  }
  func.func @transform_0(%arg0: i32) -> (i32, i32) {
    %c0_i32 = arith.constant 0 : i32
    %c0_i32_0 = arith.constant 0 : i32
    return %arg0, %c0_i32 : i32, i32
  }
  func.func @transform_1(%arg0: i32) -> (i32, i32) {
    %c0_i32 = arith.constant 0 : i32
    %c0_i32_0 = arith.constant 0 : i32
    %c0_i32_1 = arith.constant 0 : i32
    return %c0_i32, %c0_i32_0 : i32, i32
  }
  func.func @transform_2(%arg0: i32) -> (i32, i32) {
    %c0_i32 = arith.constant 0 : i32
    %c0_i32_0 = arith.constant 0 : i32
    %c0_i32_1 = arith.constant 0 : i32
    return %c0_i32, %c0_i32_0 : i32, i32
  }
  func.func @transform_3(%arg0: i32) -> (i32, i32) {
    %c0_i32 = arith.constant 0 : i32
    %c0_i32_0 = arith.constant 0 : i32
    %c0_i32_1 = arith.constant 0 : i32
    return %c0_i32, %c0_i32_0 : i32, i32
  }
  func.func @transform_4(%arg0: i32) -> (i32, i32) {
    %c0_i32 = arith.constant 0 : i32
    %c0_i32_0 = arith.constant 0 : i32
    %c0_i32_1 = arith.constant 0 : i32
    return %c0_i32, %c0_i32_0 : i32, i32
  }
  func.func @transform_5(%arg0: i32) -> (i32, i32) {
    %c0_i32 = arith.constant 0 : i32
    %c0_i32_0 = arith.constant 0 : i32
    %c0_i32_1 = arith.constant 0 : i32
    return %c0_i32, %c0_i32_0 : i32, i32
  }
  func.func @transform_6(%arg0: i32) -> (i32, i32) {
    %c0_i32 = arith.constant 0 : i32
    %c0_i32_0 = arith.constant 0 : i32
    %c0_i32_1 = arith.constant 0 : i32
    return %c0_i32, %c0_i32_0 : i32, i32
  }
  func.func @transform_7(%arg0: i32) -> (i32, i32) {
    %c0_i32 = arith.constant 0 : i32
    %c0_i32_0 = arith.constant 0 : i32
    return %arg0, %c0_i32 : i32, i32
  }
}

module attributes {stable_mosaic.version = 11 : i64} {
  func.func @_gan_disc_kernel(%arg0: i32, %arg1: memref<8x16xf32, #tpu.memory_space<vmem>>, %arg2: memref<16x128xbf16, #tpu.memory_space<vmem>>, %arg3: memref<1x128xf32, #tpu.memory_space<vmem>>, %arg4: memref<128x128xbf16, #tpu.memory_space<vmem>>, %arg5: memref<1x128xf32, #tpu.memory_space<vmem>>, %arg6: memref<1x128xf32, #tpu.memory_space<vmem>>, %arg7: memref<1x1xf32, #tpu.memory_space<vmem>>, %arg8: memref<8x1xf32, #tpu.memory_space<vmem>>) attributes {dimension_semantics = [#tpu.dimension_semantics<parallel>], iteration_bounds = array<i64: 1>, scalar_prefetch = 0 : i64, scratch_operands = 0 : i64, tpu.core_type = #tpu.core_type<tc>, window_params = [{transform_indices = @transform_0, window_bounds = array<i64: 8, 16>}, {pipeline_mode = #tpu.pipeline_mode<synchronous>, transform_indices = @transform_1, window_bounds = array<i64: 16, 128>}, {pipeline_mode = #tpu.pipeline_mode<synchronous>, transform_indices = @transform_2, window_bounds = array<i64: 1, 128>}, {pipeline_mode = #tpu.pipeline_mode<synchronous>, transform_indices = @transform_3, window_bounds = array<i64: 128, 128>}, {pipeline_mode = #tpu.pipeline_mode<synchronous>, transform_indices = @transform_4, window_bounds = array<i64: 1, 128>}, {pipeline_mode = #tpu.pipeline_mode<synchronous>, transform_indices = @transform_5, window_bounds = array<i64: 1, 128>}, {pipeline_mode = #tpu.pipeline_mode<synchronous>, transform_indices = @transform_6, window_bounds = array<i64: 1, 1>}, {transform_indices = @transform_7, window_bounds = array<i64: 8, 1>}]} {
    %c0 = arith.constant 0 : index
    %c0_0 = arith.constant 0 : index
    %0 = vector.load %arg1[%c0, %c0_0] : memref<8x16xf32, #tpu.memory_space<vmem>>, vector<8x16xf32>
    %1 = arith.truncf %0 : vector<8x16xf32> to vector<8x16xbf16>
    %c0_1 = arith.constant 0 : index
    %c0_2 = arith.constant 0 : index
    %2 = vector.load %arg2[%c0_1, %c0_2] : memref<16x128xbf16, #tpu.memory_space<vmem>>, vector<16x128xbf16>
    %cst = arith.constant dense<0.000000e+00> : vector<8x128xf32>
    %3 = tpu.matmul %1, %2, %cst {dimension_numbers = #tpu.dot_dimension_numbers<[1], [0], [0], [1], [0, 0, 1, 1], [], []>} : vector<8x16xbf16>, vector<16x128xbf16>, vector<8x128xf32> -> vector<8x128xf32>
    %c0_3 = arith.constant 0 : index
    %c0_4 = arith.constant 0 : index
    %4 = vector.load %arg3[%c0_3, %c0_4] : memref<1x128xf32, #tpu.memory_space<vmem>>, vector<1x128xf32>
    %5 = vector.broadcast %4 : vector<1x128xf32> to vector<8x128xf32>
    %6 = arith.addf %3, %5 : vector<8x128xf32>
    %cst_5 = arith.constant 0.000000e+00 : f32
    %7 = vector.broadcast %cst_5 : f32 to vector<8x128xf32>
    %8 = arith.maximumf %6, %7 : vector<8x128xf32>
    %9 = arith.truncf %8 : vector<8x128xf32> to vector<8x128xbf16>
    %c0_6 = arith.constant 0 : index
    %c0_7 = arith.constant 0 : index
    %10 = vector.load %arg4[%c0_6, %c0_7] : memref<128x128xbf16, #tpu.memory_space<vmem>>, vector<128x128xbf16>
    %cst_8 = arith.constant dense<0.000000e+00> : vector<8x128xf32>
    %11 = tpu.matmul %9, %10, %cst_8 {dimension_numbers = #tpu.dot_dimension_numbers<[1], [0], [0], [1], [0, 0, 1, 1], [], []>} : vector<8x128xbf16>, vector<128x128xbf16>, vector<8x128xf32> -> vector<8x128xf32>
    %c0_9 = arith.constant 0 : index
    %c0_10 = arith.constant 0 : index
    %12 = vector.load %arg5[%c0_9, %c0_10] : memref<1x128xf32, #tpu.memory_space<vmem>>, vector<1x128xf32>
    %13 = vector.broadcast %12 : vector<1x128xf32> to vector<8x128xf32>
    %14 = arith.addf %11, %13 : vector<8x128xf32>
    %cst_11 = arith.constant 0.000000e+00 : f32
    %15 = vector.broadcast %cst_11 : f32 to vector<8x128xf32>
    %16 = arith.maximumf %14, %15 : vector<8x128xf32>
    %c0_12 = arith.constant 0 : index
    %c0_13 = arith.constant 0 : index
    %17 = vector.load %arg6[%c0_12, %c0_13] : memref<1x128xf32, #tpu.memory_space<vmem>>, vector<1x128xf32>
    %18 = vector.broadcast %17 : vector<1x128xf32> to vector<8x128xf32>
    %19 = arith.mulf %16, %18 : vector<8x128xf32>
    %cst_14 = arith.constant dense<0.000000e+00> : vector<8xf32>
    %20 = vector.multi_reduction <add>, %19, %cst_14 [1] : vector<8x128xf32> to vector<8xf32>
    %21 = vector.shape_cast %20 : vector<8xf32> to vector<8x1xf32>
    %c0_15 = arith.constant 0 : index
    %c0_16 = arith.constant 0 : index
    %22 = vector.load %arg7[%c0_15, %c0_16] : memref<1x1xf32, #tpu.memory_space<vmem>>, vector<1x1xf32>
    %23 = vector.broadcast %22 : vector<1x1xf32> to vector<8x1xf32>
    %24 = arith.addf %21, %23 : vector<8x1xf32>
    %cst_17 = arith.constant 0.000000e+00 : f32
    %25 = vector.broadcast %cst_17 : f32 to vector<8x1xf32>
    %26 = arith.subf %25, %24 : vector<8x1xf32>
    %27 = math.exp %26 : vector<8x1xf32>
    %cst_18 = arith.constant 1.000000e+00 : f32
    %28 = vector.broadcast %cst_18 : f32 to vector<8x1xf32>
    %29 = arith.addf %28, %27 : vector<8x1xf32>
    %cst_19 = arith.constant 1.000000e+00 : f32
    %30 = vector.broadcast %cst_19 : f32 to vector<8x1xf32>
    %31 = arith.divf %30, %29 : vector<8x1xf32>
    %c0_20 = arith.constant 0 : index
    %c0_21 = arith.constant 0 : index
    %32 = vector.load %arg8[%c0_20, %c0_21] : memref<8x1xf32, #tpu.memory_space<vmem>>, vector<8x1xf32>
    tpu.vector_store %arg8[%c0_20, %c0_21], %31 {strides = array<i32>} : memref<8x1xf32, #tpu.memory_space<vmem>>, vector<8x1xf32>,
    return
  }
  func.func @transform_0(%arg0: i32) -> (i32, i32) {
    %c0_i32 = arith.constant 0 : i32
    %c0_i32_0 = arith.constant 0 : i32
    return %arg0, %c0_i32 : i32, i32
  }
  func.func @transform_1(%arg0: i32) -> (i32, i32) {
    %c0_i32 = arith.constant 0 : i32
    %c0_i32_0 = arith.constant 0 : i32
    %c0_i32_1 = arith.constant 0 : i32
    return %c0_i32, %c0_i32_0 : i32, i32
  }
  func.func @transform_2(%arg0: i32) -> (i32, i32) {
    %c0_i32 = arith.constant 0 : i32
    %c0_i32_0 = arith.constant 0 : i32
    %c0_i32_1 = arith.constant 0 : i32
    return %c0_i32, %c0_i32_0 : i32, i32
  }
  func.func @transform_3(%arg0: i32) -> (i32, i32) {
    %c0_i32 = arith.constant 0 : i32
    %c0_i32_0 = arith.constant 0 : i32
    %c0_i32_1 = arith.constant 0 : i32
    return %c0_i32, %c0_i32_0 : i32, i32
  }
  func.func @transform_4(%arg0: i32) -> (i32, i32) {
    %c0_i32 = arith.constant 0 : i32
    %c0_i32_0 = arith.constant 0 : i32
    %c0_i32_1 = arith.constant 0 : i32
    return %c0_i32, %c0_i32_0 : i32, i32
  }
  func.func @transform_5(%arg0: i32) -> (i32, i32) {
    %c0_i32 = arith.constant 0 : i32
    %c0_i32_0 = arith.constant 0 : i32
    %c0_i32_1 = arith.constant 0 : i32
    return %c0_i32, %c0_i32_0 : i32, i32
  }
  func.func @transform_6(%arg0: i32) -> (i32, i32) {
    %c0_i32 = arith.constant 0 : i32
    %c0_i32_0 = arith.constant 0 : i32
    %c0_i32_1 = arith.constant 0 : i32
    return %c0_i32, %c0_i32_0 : i32, i32
  }
  func.func @transform_7(%arg0: i32) -> (i32, i32) {
    %c0_i32 = arith.constant 0 : i32
    %c0_i32_0 = arith.constant 0 : i32
    return %arg0, %c0_i32 : i32, i32
  }
}

</mosaic_0001>

<llo_original>
// kernel: tpu_custom_call.1
$region0: #{tpu_custom_call.1}
  #allocation0 [shape = 'u32[]', space=smem, size = 0x4, offset = 0x4, fixed_abs, tag = 'smem constant byte address 0x4 - core index']
  #allocation1 [shape = 'u32[144,128]{1,0:T(1,128)}', space=vmem, size = 0x12000, scoped, tag = 'internal scratch']
  #allocation2 [shape = 'f32[1,1]{1,0:T(1,128)S(1)}', space=vmem, size = 0x200, scoped, tag = 'scoped memory for tpu_custom_call.1']
  %s0 = inlined_call_operand.hbm [shape: f32[8,16], index: 0, kind: input, shape index: {}]
  %s1 = inlined_call_operand.hbm [shape: bf16[16,128], index: 1, kind: input, shape index: {}]
  %s2 = inlined_call_operand.vmem [shape: f32[1,128], index: 2, kind: input, shape index: {}]
  %s3 = inlined_call_operand.hbm [shape: bf16[128,128], index: 3, kind: input, shape index: {}]
  %s4 = inlined_call_operand.vmem [shape: f32[1,128], index: 4, kind: input, shape index: {}]
  %s5 = inlined_call_operand.vmem [shape: f32[1,128], index: 5, kind: input, shape index: {}]
  %s6 = inlined_call_operand.<no memory space> [shape: f32[1,1], index: 6, kind: input, shape index: {}]
  %s7 = inlined_call_operand.vmem [shape: f32[8,1], index: 7, kind: output, shape index: {}]
  %s8 = sld [smem:[#allocation0]]
  $region50: #{tpu_custom_call.1} parent=0
    _
  %s10 = ssub.s32 1, %s8
  %s11 = scalar_select 0, %s10, %s8
  %v12 = vstv %s6
  %13 = vst [vmem:[#allocation2] sm:$0x1] %v12
  $region1: #{tpu_custom_call.1} parent=0
    #allocation3 [shape = 'u8[4096]{0}', space=vmem, size = 0x1000, scoped, tag = 'input window, operand 0, single buffered']
    #allocation4 [shape = 's32[1]{0}', space=sflag, size = 0x4, scoped, tag = 'scoped memory for tpu_custom_call.1']
    #allocation5 [shape = 'u8[4096]{0}', space=vmem, size = 0x1000, scoped, tag = 'input window, operand 1, single buffered']
    #allocation6 [shape = 's32[1]{0}', space=sflag, size = 0x4, scoped, tag = 'scoped memory for tpu_custom_call.1']
    #allocation7 [shape = 'u8[32768]{0}', space=vmem, size = 0x8000, scoped, tag = 'input window, operand 3, single buffered']
    %14 = vsyncpa [#allocation4], 0
    %15 = vsyncpa [#allocation6], 0
    // Predicated region
    $region2: #{tpu_custom_call.1} parent=1 // pred_check
      _
    $region3: #{tpu_custom_call.1} parent=1 // pred_check_branch
      %17 = sbr.rel (0) target = $region5
    $region4: #{tpu_custom_call.1} parent=1 // pred_region
      %s19 = ssub.s32 128, 128
      %20 = vsyncadd [#allocation4], %s19
      %s22 = sshll.u32 [#allocation3], 4
      %s23 = int_to_ptr.vmem [resolvable:$true] %s22
      %25 = dma.hbm_to_vmem [thread:$0]  %s0, 128, %s23, [#allocation4]
    $region5: #{tpu_custom_call.1} parent=1 // pred_fallthru
      _
    // Predicated region
    $region6: #{tpu_custom_call.1} parent=1 // pred_check
      _
    $region7: #{tpu_custom_call.1} parent=1 // pred_check_branch
      %27 = sbr.rel (0) target = $region9
    $region8: #{tpu_custom_call.1} parent=1 // pred_region
      %s29 = ssub.s32 128, 128
      %30 = vsyncadd [#allocation6], %s29
      %s31 = sshll.u32 [#allocation5], 4
      %s32 = int_to_ptr.vmem [resolvable:$true] %s31
      %37 = dma.hbm_to_vmem [thread:$0]  %s1, 128, %s32, [#allocation6], 64, 64, 4
    $region9: #{tpu_custom_call.1} parent=1 // pred_fallthru
      _
    // Predicated region
    $region10: #{tpu_custom_call.1} parent=1 // pred_check
      _
    $region11: #{tpu_custom_call.1} parent=1 // pred_check_branch
      %39 = sbr.rel (0) target = $region13
    $region12: #{tpu_custom_call.1} parent=1 // pred_region
      _
    $region13: #{tpu_custom_call.1} parent=1 // pred_fallthru
      _
    // Predicated region
    $region14: #{tpu_custom_call.1} parent=1 // pred_check
      _
    $region15: #{tpu_custom_call.1} parent=1 // pred_check_branch
      %41 = sbr.rel (0) target = $region17
    $region16: #{tpu_custom_call.1} parent=1 // pred_region
      %s43 = ssub.s32 1024, 1024
      %44 = vsyncadd [#allocation6], %s43
      %s45 = sshll.u32 [#allocation7], 4
      %s46 = int_to_ptr.vmem [resolvable:$true] %s45
      %51 = dma.hbm_to_vmem [thread:$0]  %s3, 1024, %s46, [#allocation6], 64, 64, 4
    $region17: #{tpu_custom_call.1} parent=1 // pred_fallthru
      _
    // Predicated region
    $region18: #{tpu_custom_call.1} parent=1 // pred_check
      _
    $region19: #{tpu_custom_call.1} parent=1 // pred_check_branch
      %53 = sbr.rel (0) target = $region21
    $region20: #{tpu_custom_call.1} parent=1 // pred_region
      _
    $region21: #{tpu_custom_call.1} parent=1 // pred_fallthru
      _
    // Predicated region
    $region22: #{tpu_custom_call.1} parent=1 // pred_check
      _
    $region23: #{tpu_custom_call.1} parent=1 // pred_check_branch
      %55 = sbr.rel (0) target = $region25
    $region24: #{tpu_custom_call.1} parent=1 // pred_region
      _
    $region25: #{tpu_custom_call.1} parent=1 // pred_fallthru
      _
    // Predicated region
    $region26: #{tpu_custom_call.1} parent=1 // pred_check
      _
    $region27: #{tpu_custom_call.1} parent=1 // pred_check_branch
      %57 = sbr.rel (0) target = $region29
    $region28: #{tpu_custom_call.1} parent=1 // pred_region
      _
    $region29: #{tpu_custom_call.1} parent=1 // pred_fallthru
      _
    // Predicated region
    $region30: #{tpu_custom_call.1} parent=1 // pred_check
      _
    $region31: #{tpu_custom_call.1} parent=1 // pred_check_branch
      %59 = sbr.rel (0) target = $region33
    $region32: #{tpu_custom_call.1} parent=1 // pred_region
      %60 = dma.done [#allocation4], 128
    $region33: #{tpu_custom_call.1} parent=1 // pred_fallthru
      _
    // Predicated region
    $region34: #{tpu_custom_call.1} parent=1 // pred_check
      _
    $region35: #{tpu_custom_call.1} parent=1 // pred_check_branch
      %62 = sbr.rel (0) target = $region37
    $region36: #{tpu_custom_call.1} parent=1 // pred_region
      %63 = dma.done [#allocation6], 128
    $region37: #{tpu_custom_call.1} parent=1 // pred_fallthru
      _
    // Predicated region
    $region38: #{tpu_custom_call.1} parent=1 // pred_check
      _
    $region39: #{tpu_custom_call.1} parent=1 // pred_check_branch
      %65 = sbr.rel (0) target = $region41
    $region40: #{tpu_custom_call.1} parent=1 // pred_region
      %66 = dma.done [#allocation6], 1024
    $region41: #{tpu_custom_call.1} parent=1 // pred_fallthru
      _
    %v68 = vld [vmem:[#allocation3] sm:$0xff]
    %v69 = vpack.c.bf16 %v68, %v68
    %v70 = vld [vmem:[#allocation5] sm:$0xf]
    %v71 = vld [vmem:[#allocation5 + $0x4] sm:$0xf]
    %v72 = vld [vmem:[%s2] sm:$0x1]
    %v74 = vlaneseq
    %v75 = vshrl.u32 %v74, 7
    %v76 = vsub.s32 0, %v75
    %v77 = vrot.slane %v72, %v76
    %v81 = vunpack.c.l.b16 %v70
    %v82 = vunpack.c.l.b16 %v71
    %v83 = vpack.c.b16 %v82, %v81
    %vm85 = vcmask 130048
    %v87 = vsel %vm85, %v69, 0
    %89 = vmatprep.subr.bf16.mxu0 0
    %90 = vmatpush1.bf16.msra.mxu0 0
    %91 = vmatprep.subr.bf16.mxu0 0
    %92 = vmatpush1.bf16.msra.mxu0 0
    %93 = vmatprep.subr.bf16.mxu0 0
    %94 = vmatpush1.bf16.msra.mxu0 0
    %95 = vmatprep.subr.bf16.mxu0 0
    %96 = vmatpush1.bf16.msra.mxu0 0
    %97 = vmatprep.subr.bf16.mxu0 0
    %98 = vmatpush1.bf16.msra.mxu0 0
    %99 = vmatprep.subr.bf16.mxu0 0
    %100 = vmatpush1.bf16.msra.mxu0 0
    %101 = vmatprep.subr.bf16.mxu0 0
    %102 = vmatpush1.bf16.msra.mxu0 0
    %103 = vmatprep.subr.bf16.mxu0 0
    %104 = vmatpush1.bf16.msra.mxu0 %v83
    %105 = vmatprep.subr.bf16.mxu0 0
    %106 = vmatpush2.bf16.msra.mxu0 0
    %107 = vmatprep.subr.bf16.mxu0 0
    %108 = vmatpush2.bf16.msra.mxu0 0
    %109 = vmatprep.subr.bf16.mxu0 0
    %110 = vmatpush2.bf16.msra.mxu0 0
    %111 = vmatprep.subr.bf16.mxu0 0
    %112 = vmatpush2.bf16.msra.mxu0 0
    %113 = vmatprep.subr.bf16.mxu0 0
    %114 = vmatpush2.bf16.msra.mxu0 0
    %115 = vmatprep.subr.bf16.mxu0 0
    %116 = vmatpush2.bf16.msra.mxu0 0
    %117 = vmatprep.subr.bf16.mxu0 0
    %118 = vmatpush2.bf16.msra.mxu0 0
    %119 = vmatprep.subr.bf16.mxu0 0
    %120 = vmatpush2.bf16.msra.mxu0 0
    %121 = vmatprep.mubr.bf16.mxu0 0
    %122 = vmatmul.mubr.bf16.gmra.mxu0 %v87
    %v123 = vpop.f32.mrf.mxu0
    %v124 = vadd.f32 %v77, %v123
    %v125 = vpop.f32.mrf.mxu0
    %v126 = vpop.f32.mrf.mxu0
    %v127 = vpop.f32.mrf.mxu0
    %128 = vdwg.mxu0
    %v129 = vmax.f32 %v124, 0.0
    %v130 = vpack.c.bf16 %v129, %v129
    %v131 = vld [vmem:[#allocation7] sm:$0xf]
    %v132 = vld [vmem:[#allocation7 + $0x4] sm:$0xf]
    %v133 = vld [vmem:[#allocation7 + $0x8] sm:$0xf]
    %v134 = vld [vmem:[#allocation7 + $0xc] sm:$0xf]
    %v135 = vld [vmem:[#allocation7 + $0x10] sm:$0xf]
    %v136 = vld [vmem:[#allocation7 + $0x14] sm:$0xf]
    %v137 = vld [vmem:[#allocation7 + $0x18] sm:$0xf]
    %v138 = vld [vmem:[#allocation7 + $0x1c] sm:$0xf]
    %v139 = vld [vmem:[#allocation7 + $0x20] sm:$0xf]
    %v140 = vld [vmem:[#allocation7 + $0x24] sm:$0xf]
    %v141 = vld [vmem:[#allocation7 + $0x28] sm:$0xf]
    %v142 = vld [vmem:[#allocation7 + $0x2c] sm:$0xf]
    %v143 = vld [vmem:[#allocation7 + $0x30] sm:$0xf]
    %v144 = vld [vmem:[#allocation7 + $0x34] sm:$0xf]
    %v145 = vld [vmem:[#allocation7 + $0x38] sm:$0xf]
    %v146 = vld [vmem:[#allocation7 + $0x3c] sm:$0xf]
    %v147 = vld [vmem:[%s4] sm:$0x1]
    %v149 = vlaneseq
    %v150 = vshrl.u32 %v149, 7
    %v151 = vsub.s32 0, %v150
    %v152 = vrot.slane %v147, %v151
    %v170 = vunpack.c.l.b16 %v131
    %v171 = vunpack.c.l.b16 %v132
    %v172 = vunpack.c.l.b16 %v133
    %v173 = vunpack.c.l.b16 %v134
    %v174 = vunpack.c.l.b16 %v135
    %v175 = vunpack.c.l.b16 %v136
    %v176 = vunpack.c.l.b16 %v137
    %v177 = vunpack.c.l.b16 %v138
    %v178 = vunpack.c.l.b16 %v139
    %v179 = vunpack.c.l.b16 %v140
    %v180 = vunpack.c.l.b16 %v141
    %v181 = vunpack.c.l.b16 %v142
    %v182 = vunpack.c.l.b16 %v143
    %v183 = vunpack.c.l.b16 %v144
    %v184 = vunpack.c.l.b16 %v145
    %v185 = vunpack.c.l.b16 %v146
    %v186 = vpack.c.b16 %v171, %v170
    %v187 = vpack.c.b16 %v173, %v172
    %v188 = vpack.c.b16 %v175, %v174
    %v189 = vpack.c.b16 %v177, %v176
    %v190 = vpack.c.b16 %v179, %v178
    %v191 = vpack.c.b16 %v181, %v180
    %v192 = vpack.c.b16 %v183, %v182
    %v193 = vpack.c.b16 %v185, %v184
    %202 = vmatprep.subr.bf16.mxu0 0
    %203 = vmatpush1.bf16.msra.mxu0 %v193
    %204 = vmatprep.subr.bf16.mxu0 0
    %205 = vmatpush1.bf16.msra.mxu0 %v192
    %206 = vmatprep.subr.bf16.mxu0 0
    %207 = vmatpush1.bf16.msra.mxu0 %v191
    %208 = vmatprep.subr.bf16.mxu0 0
    %209 = vmatpush1.bf16.msra.mxu0 %v190
    %210 = vmatprep.subr.bf16.mxu0 0
    %211 = vmatpush1.bf16.msra.mxu0 %v189
    %212 = vmatprep.subr.bf16.mxu0 0
    %213 = vmatpush1.bf16.msra.mxu0 %v188
    %214 = vmatprep.subr.bf16.mxu0 0
    %215 = vmatpush1.bf16.msra.mxu0 %v187
    %216 = vmatprep.subr.bf16.mxu0 0
    %217 = vmatpush1.bf16.msra.mxu0 %v186
    %218 = vmatprep.subr.bf16.mxu0 0
    %219 = vmatpush2.bf16.msra.mxu0 0
    %220 = vmatprep.subr.bf16.mxu0 0
    %221 = vmatpush2.bf16.msra.mxu0 0
    %222 = vmatprep.subr.bf16.mxu0 0
    %223 = vmatpush2.bf16.msra.mxu0 0
    %224 = vmatprep.subr.bf16.mxu0 0
    %225 = vmatpush2.bf16.msra.mxu0 0
    %226 = vmatprep.subr.bf16.mxu0 0
    %227 = vmatpush2.bf16.msra.mxu0 0
    %228 = vmatprep.subr.bf16.mxu0 0
    %229 = vmatpush2.bf16.msra.mxu0 0
    %230 = vmatprep.subr.bf16.mxu0 0
    %231 = vmatpush2.bf16.msra.mxu0 0
    %232 = vmatprep.subr.bf16.mxu0 0
    %233 = vmatpush2.bf16.msra.mxu0 0
    %234 = vmatprep.mubr.bf16.mxu0 0
    %235 = vmatmul.mubr.bf16.gmra.mxu0 %v130
    %v236 = vpop.f32.mrf.mxu0
    %v237 = vadd.f32 %v152, %v236
    %v238 = vpop.f32.mrf.mxu0
    %v239 = vpop.f32.mrf.mxu0
    %v240 = vpop.f32.mrf.mxu0
    %241 = vdwg.mxu0
    %v242 = vmax.f32 %v237, 0.0
    %v243 = vld [vmem:[%s5] sm:$0x1]
    %v245 = vlaneseq
    %v246 = vshrl.u32 %v245, 7
    %v247 = vsub.s32 0, %v246
    %v248 = vrot.slane %v243, %v247
    %v250 = vmul.f32 %v242, %v248
    %251 = vadd.xlane.f32.xlu0 %v250
    %v252 = vpop.xlane.xlu0 %251
    %v253 = vld [vmem:[#allocation2] sm:$0x1]
    %v255 = vlaneseq
    %v256 = vshrl.u32 %v255, 7
    %v257 = vsub.s32 0, %v256
    %v258 = vrot.slane %v253, %v257
    %v260 = vadd.f32 %v252, %v258
    %v261 = vsub.f32 0.0, %v260
    %v262 = vmul.f32 %v261, 1.442695
    %v263 = vpow.pop %v262
    %v264 = vadd.f32 %v263, 1.0
    %v265 = vrcp.pop %v264
    %v266 = vmul.f32 1.0, %v265
    %vm267 = vcmask 7168
    %268 = vst.msk [vmem:[%s7] sm:$0xff] %vm267, %v266
    // Predicated region
    $region42: #{tpu_custom_call.1} parent=1 // pred_check
      _
    $region43: #{tpu_custom_call.1} parent=1 // pred_check_branch
      %270 = sbr.rel (0) target = $region45
    $region44: #{tpu_custom_call.1} parent=1 // pred_region
      _
    $region45: #{tpu_custom_call.1} parent=1 // pred_fallthru
      _
    // Predicated region
    $region46: #{tpu_custom_call.1} parent=1 // pred_check
      _
    $region47: #{tpu_custom_call.1} parent=1 // pred_check_branch
      %272 = sbr.rel (0) target = $region49
    $region48: #{tpu_custom_call.1} parent=1 // pred_region
      _
    $region49: #{tpu_custom_call.1} parent=1 // pred_fallthru
      _
    %273 = vsyncpa [#allocation4], 1
    %274 = vsyncpa [#allocation6], 1

// kernel: tpu_custom_call.1
$region0: #{tpu_custom_call.1}
  #allocation0 [shape = 'u32[]', space=smem, size = 0x4, offset = 0x4, fixed_abs, tag = 'smem constant byte address 0x4 - core index']
  #allocation1 [shape = 'u32[144,128]{1,0:T(1,128)}', space=vmem, size = 0x12000, scoped, tag = 'internal scratch']
  #allocation2 [shape = 'f32[1,1]{1,0:T(1,128)S(1)}', space=vmem, size = 0x200, scoped, tag = 'scoped memory for tpu_custom_call.1']
  %s0 = inlined_call_operand.hbm [shape: f32[8,16], index: 0, kind: input, shape index: {}]
  %s1 = inlined_call_operand.hbm [shape: bf16[16,128], index: 1, kind: input, shape index: {}]
  %s2 = inlined_call_operand.vmem [shape: f32[1,128], index: 2, kind: input, shape index: {}]
  %s3 = inlined_call_operand.hbm [shape: bf16[128,128], index: 3, kind: input, shape index: {}]
  %s4 = inlined_call_operand.vmem [shape: f32[1,128], index: 4, kind: input, shape index: {}]
  %s5 = inlined_call_operand.vmem [shape: f32[1,128], index: 5, kind: input, shape index: {}]
  %s6 = inlined_call_operand.<no memory space> [shape: f32[1,1], index: 6, kind: input, shape index: {}]
  %s7 = inlined_call_operand.vmem [shape: f32[8,1], index: 7, kind: output, shape index: {}]
  %s8 = sld [smem:[#allocation0]]
  $region50: #{tpu_custom_call.1} parent=0
    _
  %s10 = ssub.s32 1, %s8
  %s11 = scalar_select 0, %s10, %s8
  %v12 = vstv %s6
  %13 = vst [vmem:[#allocation2] sm:$0x1] %v12
  $region1: #{tpu_custom_call.1} parent=0
    #allocation3 [shape = 'u8[4096]{0}', space=vmem, size = 0x1000, scoped, tag = 'input window, operand 0, single buffered']
    #allocation4 [shape = 's32[1]{0}', space=sflag, size = 0x4, scoped, tag = 'scoped memory for tpu_custom_call.1']
    #allocation5 [shape = 'u8[4096]{0}', space=vmem, size = 0x1000, scoped, tag = 'input window, operand 1, single buffered']
    #allocation6 [shape = 's32[1]{0}', space=sflag, size = 0x4, scoped, tag = 'scoped memory for tpu_custom_call.1']
    #allocation7 [shape = 'u8[32768]{0}', space=vmem, size = 0x8000, scoped, tag = 'input window, operand 3, single buffered']
    %14 = vsyncpa [#allocation4], 0
    %15 = vsyncpa [#allocation6], 0
    // Predicated region
    $region2: #{tpu_custom_call.1} parent=1 // pred_check
      _
    $region3: #{tpu_custom_call.1} parent=1 // pred_check_branch
      %17 = sbr.rel (0) target = $region5
    $region4: #{tpu_custom_call.1} parent=1 // pred_region
      %s19 = ssub.s32 128, 128
      %20 = vsyncadd [#allocation4], %s19
      %s22 = sshll.u32 [#allocation3], 4
      %s23 = int_to_ptr.vmem [resolvable:$true] %s22
      %25 = dma.hbm_to_vmem [thread:$0]  %s0, 128, %s23, [#allocation4]
    $region5: #{tpu_custom_call.1} parent=1 // pred_fallthru
      _
    // Predicated region
    $region6: #{tpu_custom_call.1} parent=1 // pred_check
      _
    $region7: #{tpu_custom_call.1} parent=1 // pred_check_branch
      %27 = sbr.rel (0) target = $region9
    $region8: #{tpu_custom_call.1} parent=1 // pred_region
      %s29 = ssub.s32 128, 128
      %30 = vsyncadd [#allocation6], %s29
      %s31 = sshll.u32 [#allocation5], 4
      %s32 = int_to_ptr.vmem [resolvable:$true] %s31
      %37 = dma.hbm_to_vmem [thread:$0]  %s1, 128, %s32, [#allocation6], 64, 64, 4
    $region9: #{tpu_custom_call.1} parent=1 // pred_fallthru
      _
    // Predicated region
    $region10: #{tpu_custom_call.1} parent=1 // pred_check
      _
    $region11: #{tpu_custom_call.1} parent=1 // pred_check_branch
      %39 = sbr.rel (0) target = $region13
    $region12: #{tpu_custom_call.1} parent=1 // pred_region
      _
    $region13: #{tpu_custom_call.1} parent=1 // pred_fallthru
      _
    // Predicated region
    $region14: #{tpu_custom_call.1} parent=1 // pred_check
      _
    $region15: #{tpu_custom_call.1} parent=1 // pred_check_branch
      %41 = sbr.rel (0) target = $region17
    $region16: #{tpu_custom_call.1} parent=1 // pred_region
      %s43 = ssub.s32 1024, 1024
      %44 = vsyncadd [#allocation6], %s43
      %s45 = sshll.u32 [#allocation7], 4
      %s46 = int_to_ptr.vmem [resolvable:$true] %s45
      %51 = dma.hbm_to_vmem [thread:$0]  %s3, 1024, %s46, [#allocation6], 64, 64, 4
    $region17: #{tpu_custom_call.1} parent=1 // pred_fallthru
      _
    // Predicated region
    $region18: #{tpu_custom_call.1} parent=1 // pred_check
      _
    $region19: #{tpu_custom_call.1} parent=1 // pred_check_branch
      %53 = sbr.rel (0) target = $region21
    $region20: #{tpu_custom_call.1} parent=1 // pred_region
      _
    $region21: #{tpu_custom_call.1} parent=1 // pred_fallthru
      _
    // Predicated region
    $region22: #{tpu_custom_call.1} parent=1 // pred_check
      _
    $region23: #{tpu_custom_call.1} parent=1 // pred_check_branch
      %55 = sbr.rel (0) target = $region25
    $region24: #{tpu_custom_call.1} parent=1 // pred_region
      _
    $region25: #{tpu_custom_call.1} parent=1 // pred_fallthru
      _
    // Predicated region
    $region26: #{tpu_custom_call.1} parent=1 // pred_check
      _
    $region27: #{tpu_custom_call.1} parent=1 // pred_check_branch
      %57 = sbr.rel (0) target = $region29
    $region28: #{tpu_custom_call.1} parent=1 // pred_region
      _
    $region29: #{tpu_custom_call.1} parent=1 // pred_fallthru
      _
    // Predicated region
    $region30: #{tpu_custom_call.1} parent=1 // pred_check
      _
    $region31: #{tpu_custom_call.1} parent=1 // pred_check_branch
      %59 = sbr.rel (0) target = $region33
    $region32: #{tpu_custom_call.1} parent=1 // pred_region
      %60 = dma.done [#allocation4], 128
    $region33: #{tpu_custom_call.1} parent=1 // pred_fallthru
      _
    // Predicated region
    $region34: #{tpu_custom_call.1} parent=1 // pred_check
      _
    $region35: #{tpu_custom_call.1} parent=1 // pred_check_branch
      %62 = sbr.rel (0) target = $region37
    $region36: #{tpu_custom_call.1} parent=1 // pred_region
      %63 = dma.done [#allocation6], 128
    $region37: #{tpu_custom_call.1} parent=1 // pred_fallthru
      _
    // Predicated region
    $region38: #{tpu_custom_call.1} parent=1 // pred_check
      _
    $region39: #{tpu_custom_call.1} parent=1 // pred_check_branch
      %65 = sbr.rel (0) target = $region41
    $region40: #{tpu_custom_call.1} parent=1 // pred_region
      %66 = dma.done [#allocation6], 1024
    $region41: #{tpu_custom_call.1} parent=1 // pred_fallthru
      _
    %v68 = vld [vmem:[#allocation3] sm:$0xff]
    %v69 = vpack.c.bf16 %v68, %v68
    %v70 = vld [vmem:[#allocation5] sm:$0xf]
    %v71 = vld [vmem:[#allocation5 + $0x4] sm:$0xf]
    %v72 = vld [vmem:[%s2] sm:$0x1]
    %v74 = vlaneseq
    %v75 = vshrl.u32 %v74, 7
    %v76 = vsub.s32 0, %v75
    %v77 = vrot.slane %v72, %v76
    %v81 = vunpack.c.l.b16 %v70
    %v82 = vunpack.c.l.b16 %v71
    %v83 = vpack.c.b16 %v82, %v81
    %vm85 = vcmask 130048
    %v87 = vsel %vm85, %v69, 0
    %89 = vmatprep.subr.bf16.mxu0 0
    %90 = vmatpush1.bf16.msra.mxu0 0
    %91 = vmatprep.subr.bf16.mxu0 0
    %92 = vmatpush1.bf16.msra.mxu0 0
    %93 = vmatprep.subr.bf16.mxu0 0
    %94 = vmatpush1.bf16.msra.mxu0 0
    %95 = vmatprep.subr.bf16.mxu0 0
    %96 = vmatpush1.bf16.msra.mxu0 0
    %97 = vmatprep.subr.bf16.mxu0 0
    %98 = vmatpush1.bf16.msra.mxu0 0
    %99 = vmatprep.subr.bf16.mxu0 0
    %100 = vmatpush1.bf16.msra.mxu0 0
    %101 = vmatprep.subr.bf16.mxu0 0
    %102 = vmatpush1.bf16.msra.mxu0 0
    %103 = vmatprep.subr.bf16.mxu0 0
    %104 = vmatpush1.bf16.msra.mxu0 %v83
    %105 = vmatprep.subr.bf16.mxu0 0
    %106 = vmatpush2.bf16.msra.mxu0 0
    %107 = vmatprep.subr.bf16.mxu0 0
    %108 = vmatpush2.bf16.msra.mxu0 0
    %109 = vmatprep.subr.bf16.mxu0 0
    %110 = vmatpush2.bf16.msra.mxu0 0
    %111 = vmatprep.subr.bf16.mxu0 0
    %112 = vmatpush2.bf16.msra.mxu0 0
    %113 = vmatprep.subr.bf16.mxu0 0
    %114 = vmatpush2.bf16.msra.mxu0 0
    %115 = vmatprep.subr.bf16.mxu0 0
    %116 = vmatpush2.bf16.msra.mxu0 0
    %117 = vmatprep.subr.bf16.mxu0 0
    %118 = vmatpush2.bf16.msra.mxu0 0
    %119 = vmatprep.subr.bf16.mxu0 0
    %120 = vmatpush2.bf16.msra.mxu0 0
    %121 = vmatprep.mubr.bf16.mxu0 0
    %122 = vmatmul.mubr.bf16.gmra.mxu0 %v87
    %v123 = vpop.f32.mrf.mxu0
    %v124 = vadd.f32 %v77, %v123
    %v125 = vpop.f32.mrf.mxu0
    %v126 = vpop.f32.mrf.mxu0
    %v127 = vpop.f32.mrf.mxu0
    %128 = vdwg.mxu0
    %v129 = vmax.f32 %v124, 0.0
    %v130 = vpack.c.bf16 %v129, %v129
    %v131 = vld [vmem:[#allocation7] sm:$0xf]
    %v132 = vld [vmem:[#allocation7 + $0x4] sm:$0xf]
    %v133 = vld [vmem:[#allocation7 + $0x8] sm:$0xf]
    %v134 = vld [vmem:[#allocation7 + $0xc] sm:$0xf]
    %v135 = vld [vmem:[#allocation7 + $0x10] sm:$0xf]
    %v136 = vld [vmem:[#allocation7 + $0x14] sm:$0xf]
    %v137 = vld [vmem:[#allocation7 + $0x18] sm:$0xf]
    %v138 = vld [vmem:[#allocation7 + $0x1c] sm:$0xf]
    %v139 = vld [vmem:[#allocation7 + $0x20] sm:$0xf]
    %v140 = vld [vmem:[#allocation7 + $0x24] sm:$0xf]
    %v141 = vld [vmem:[#allocation7 + $0x28] sm:$0xf]
    %v142 = vld [vmem:[#allocation7 + $0x2c] sm:$0xf]
    %v143 = vld [vmem:[#allocation7 + $0x30] sm:$0xf]
    %v144 = vld [vmem:[#allocation7 + $0x34] sm:$0xf]
    %v145 = vld [vmem:[#allocation7 + $0x38] sm:$0xf]
    %v146 = vld [vmem:[#allocation7 + $0x3c] sm:$0xf]
    %v147 = vld [vmem:[%s4] sm:$0x1]
    %v149 = vlaneseq
    %v150 = vshrl.u32 %v149, 7
    %v151 = vsub.s32 0, %v150
    %v152 = vrot.slane %v147, %v151
    %v170 = vunpack.c.l.b16 %v131
    %v171 = vunpack.c.l.b16 %v132
    %v172 = vunpack.c.l.b16 %v133
    %v173 = vunpack.c.l.b16 %v134
    %v174 = vunpack.c.l.b16 %v135
    %v175 = vunpack.c.l.b16 %v136
    %v176 = vunpack.c.l.b16 %v137
    %v177 = vunpack.c.l.b16 %v138
    %v178 = vunpack.c.l.b16 %v139
    %v179 = vunpack.c.l.b16 %v140
    %v180 = vunpack.c.l.b16 %v141
    %v181 = vunpack.c.l.b16 %v142
    %v182 = vunpack.c.l.b16 %v143
    %v183 = vunpack.c.l.b16 %v144
    %v184 = vunpack.c.l.b16 %v145
    %v185 = vunpack.c.l.b16 %v146
    %v186 = vpack.c.b16 %v171, %v170
    %v187 = vpack.c.b16 %v173, %v172
    %v188 = vpack.c.b16 %v175, %v174
    %v189 = vpack.c.b16 %v177, %v176
    %v190 = vpack.c.b16 %v179, %v178
    %v191 = vpack.c.b16 %v181, %v180
    %v192 = vpack.c.b16 %v183, %v182
    %v193 = vpack.c.b16 %v185, %v184
    %202 = vmatprep.subr.bf16.mxu0 0
    %203 = vmatpush1.bf16.msra.mxu0 %v193
    %204 = vmatprep.subr.bf16.mxu0 0
    %205 = vmatpush1.bf16.msra.mxu0 %v192
    %206 = vmatprep.subr.bf16.mxu0 0
    %207 = vmatpush1.bf16.msra.mxu0 %v191
    %208 = vmatprep.subr.bf16.mxu0 0
    %209 = vmatpush1.bf16.msra.mxu0 %v190
    %210 = vmatprep.subr.bf16.mxu0 0
    %211 = vmatpush1.bf16.msra.mxu0 %v189
    %212 = vmatprep.subr.bf16.mxu0 0
    %213 = vmatpush1.bf16.msra.mxu0 %v188
    %214 = vmatprep.subr.bf16.mxu0 0
    %215 = vmatpush1.bf16.msra.mxu0 %v187
    %216 = vmatprep.subr.bf16.mxu0 0
    %217 = vmatpush1.bf16.msra.mxu0 %v186
    %218 = vmatprep.subr.bf16.mxu0 0
    %219 = vmatpush2.bf16.msra.mxu0 0
    %220 = vmatprep.subr.bf16.mxu0 0
    %221 = vmatpush2.bf16.msra.mxu0 0
    %222 = vmatprep.subr.bf16.mxu0 0
    %223 = vmatpush2.bf16.msra.mxu0 0
    %224 = vmatprep.subr.bf16.mxu0 0
    %225 = vmatpush2.bf16.msra.mxu0 0
    %226 = vmatprep.subr.bf16.mxu0 0
    %227 = vmatpush2.bf16.msra.mxu0 0
    %228 = vmatprep.subr.bf16.mxu0 0
    %229 = vmatpush2.bf16.msra.mxu0 0
    %230 = vmatprep.subr.bf16.mxu0 0
    %231 = vmatpush2.bf16.msra.mxu0 0
    %232 = vmatprep.subr.bf16.mxu0 0
    %233 = vmatpush2.bf16.msra.mxu0 0
    %234 = vmatprep.mubr.bf16.mxu0 0
    %235 = vmatmul.mubr.bf16.gmra.mxu0 %v130
    %v236 = vpop.f32.mrf.mxu0
    %v237 = vadd.f32 %v152, %v236
    %v238 = vpop.f32.mrf.mxu0
    %v239 = vpop.f32.mrf.mxu0
    %v240 = vpop.f32.mrf.mxu0
    %241 = vdwg.mxu0
    %v242 = vmax.f32 %v237, 0.0
    %v243 = vld [vmem:[%s5] sm:$0x1]
    %v245 = vlaneseq
    %v246 = vshrl.u32 %v245, 7
    %v247 = vsub.s32 0, %v246
    %v248 = vrot.slane %v243, %v247
    %v250 = vmul.f32 %v242, %v248
    %251 = vadd.xlane.f32.xlu0 %v250
    %v252 = vpop.xlane.xlu0 %251
    %v253 = vld [vmem:[#allocation2] sm:$0x1]
    %v255 = vlaneseq
    %v256 = vshrl.u32 %v255, 7
    %v257 = vsub.s32 0, %v256
    %v258 = vrot.slane %v253, %v257
    %v260 = vadd.f32 %v252, %v258
    %v261 = vsub.f32 0.0, %v260
    %v262 = vmul.f32 %v261, 1.442695
    %v263 = vpow.pop %v262
    %v264 = vadd.f32 %v263, 1.0
    %v265 = vrcp.pop %v264
    %v266 = vmul.f32 1.0, %v265
    %vm267 = vcmask 7168
    %268 = vst.msk [vmem:[%s7] sm:$0xff] %vm267, %v266
    // Predicated region
    $region42: #{tpu_custom_call.1} parent=1 // pred_check
      _
    $region43: #{tpu_custom_call.1} parent=1 // pred_check_branch
      %270 = sbr.rel (0) target = $region45
    $region44: #{tpu_custom_call.1} parent=1 // pred_region
      _
    $region45: #{tpu_custom_call.1} parent=1 // pred_fallthru
      _
    // Predicated region
    $region46: #{tpu_custom_call.1} parent=1 // pred_check
      _
    $region47: #{tpu_custom_call.1} parent=1 // pred_check_branch
      %272 = sbr.rel (0) target = $region49
    $region48: #{tpu_custom_call.1} parent=1 // pred_region
      _
    $region49: #{tpu_custom_call.1} parent=1 // pred_fallthru
      _
    %273 = vsyncpa [#allocation4], 1
    %274 = vsyncpa [#allocation6], 1

</llo_original>
